<compile_context>
chip_gen: v5e
topology: v5e:2x2
jax: 0.10.0
libtpu: 0.0.40
codegen_flags: <defaults>
</compile_context>

<pallas_src>
import math
import functools

import jax
import jax.numpy as jnp
from jax.experimental import pallas as pl
from jax.experimental.pallas import tpu as pltpu

_LANE = 128
_SUBLANE = 8
_VMEM_LIMIT = 48 * 1024 * 1024   # fits under v7x's 64 MiB; ample on v5e/v6e.


def _round_up(x, mult):
    return ((x + mult - 1) // mult) * mult


def _pad2(x, rows, cols):
    r, c = x.shape
    return jnp.pad(x, ((0, rows - r), (0, cols - c)))


# ---------------------------------------------------------------------------
# Linear projection kernel: y = x @ w + b (bf16 operands, f32 accumulation).
# Hoisted out of the attention grid so each projection is computed exactly once
# instead of once per query tile.
# ---------------------------------------------------------------------------
def _linear_kernel(x_ref, w_ref, b_ref, o_ref):
    acc = jnp.dot(x_ref[...], w_ref[...], preferred_element_type=jnp.float32)
    o_ref[...] = (acc + b_ref[...]).astype(o_ref.dtype)


def _linear(x, w, b, *, tile_rows, out_dtype=jnp.bfloat16):
    rows, cin = x.shape
    _, cout = w.shape
    assert rows % tile_rows == 0
    # TODO(synk): the constant-index weight/bias blocks could use
    # pipeline_mode=pl.Buffered(1) to drop their unused second pipeline buffer.
    return pl.pallas_call(
        _linear_kernel,
        out_shape=jax.ShapeDtypeStruct((rows, cout), out_dtype),
        grid_spec=pltpu.PrefetchScalarGridSpec(
            num_scalar_prefetch=0,
            grid=(rows // tile_rows,),
            in_specs=[pl.BlockSpec((tile_rows, cin), lambda i: (i, 0)),
                      pl.BlockSpec((cin, cout), lambda i: (0, 0)),
                      pl.BlockSpec((1, cout), lambda i: (0, 0))],
            out_specs=pl.BlockSpec((tile_rows, cout), lambda i: (i, 0)),
        ),
        compiler_params=pltpu.CompilerParams(
            dimension_semantics=("parallel",),
            vmem_limit_bytes=_VMEM_LIMIT,
        ),
    )(x, w, b)


# ---------------------------------------------------------------------------
# Flash-style attention kernel over (query-tile, kv-tile) grid with online
# softmax. Consumes pre-projected lin_q/lin_k/lin_v (bf16).
# ---------------------------------------------------------------------------
def _flash_attn_kernel(*refs, m_valid, use_mask, tkv):
    if use_mask:
        q_ref, k_ref, v_ref, seqlen_ref, o_ref, m_sc, l_sc, acc_sc = refs
    else:
        q_ref, k_ref, v_ref, o_ref, m_sc, l_sc, acc_sc = refs

    kv = pl.program_id(1)

    @pl.when(kv == 0)
    def _():
        m_sc[...] = jnp.full_like(m_sc, -jnp.inf)
        l_sc[...] = jnp.zeros_like(l_sc)
        acc_sc[...] = jnp.zeros_like(acc_sc)

    # scores = lin_q @ lin_k^T for this K/V tile; contract last-vs-last dim so
    # no explicit transpose goes through the XLU. bf16 operands, f32 accumulate.
    # (1/sqrt(hidden_dim) already folded into the query projection.)
    scores = jax.lax.dot_general(
        q_ref[...], k_ref[...],
        dimension_numbers=(((1,), (1,)), ((), ())),
        preferred_element_type=jnp.float32)

    tq = scores.shape[0]
    col = jax.lax.broadcasted_iota(jnp.int32, (tq, tkv), 1) + kv * tkv
    in_bounds = col < m_valid                       # zero-padded key rows
    scores = jnp.where(in_bounds, scores, jnp.float32(-2e9))
    if use_mask:
        # Masked-but-real columns get -1e9 (matches reference); padded columns
        # stay strictly lower so seq_len==0 rows softmax over the m real keys.
        neg = jnp.where(in_bounds, jnp.float32(-1e9), jnp.float32(-2e9))
        scores = jnp.where(col < seqlen_ref[...], scores, neg)

    # Online softmax (f32 elementwise math; safe on v5e's no-bf16 VPU/EUP).
    m_prev = m_sc[...]
    m_new = jnp.maximum(m_prev, jnp.max(scores, axis=-1, keepdims=True))
    alpha = jnp.exp(m_prev - m_new)
    p = jnp.exp(scores - m_new)
    l_sc[...] = alpha * l_sc[...] + jnp.sum(p, axis=-1, keepdims=True)
    acc_sc[...] = alpha * acc_sc[...] + jnp.dot(
        p.astype(jnp.bfloat16), v_ref[...], preferred_element_type=jnp.float32)
    m_sc[...] = m_new

    @pl.when(kv == pl.num_programs(1) - 1)
    def _():
        o_ref[...] = (acc_sc[...] *
                      pl.reciprocal(l_sc[...], approx=True)).astype(o_ref.dtype)


def qkv_attention(query, key, value, params, *, hidden_dim, output_dim,
                  seq_lens=None):
    """params: wq (d_q,H), bq (1,H), wk (d_k,H), bk (1,H), wv (d_v,O), bv (1,O)
    (weights pre-transposed to (in, out)). seq_lens: optional (n,) int32."""
    n, d_q = query.shape
    m, d_k = key.shape
    _, d_v = value.shape
    use_mask = seq_lens is not None

    # Lane-dense / sublane-aligned padded shapes.
    dq_p = _round_up(d_q, _LANE)
    dk_p = _round_up(d_k, _LANE)
    dv_p = _round_up(d_v, _LANE)
    h_p = _round_up(hidden_dim, _LANE)
    o_p = _round_up(output_dim, _LANE)
    m_p = _round_up(m, _LANE)       # lane dim of score tiles / P@V contraction

    # Query tile: aim for >= 2 grid steps (v7x megacore), cap at 256 rows.
    if n <= _SUBLANE:
        tq = _SUBLANE
    else:
        tq = min(256, _round_up((n + 1) // 2, _SUBLANE))
    n_p = _round_up(n, tq)

    # K/V tile: largest of {512, 256, 128} dividing m_p; bounds the attention
    # kernel's VMEM independent of m.
    tkv = 128
    for cand in (512, 256, 128):
        if m_p % cand == 0:
            tkv = cand
            break

    bf16, f32 = jnp.bfloat16, jnp.float32
    scale = f32(1.0 / math.sqrt(hidden_dim))

    # bf16 operands (f32 accumulation in-kernel) halve HBM<->VMEM DMA bytes.
    q_p = _pad2(query.astype(f32), n_p, dq_p).astype(bf16)
    k_p = _pad2(key.astype(f32), m_p, dk_p).astype(bf16)
    v_p = _pad2(value.astype(f32), m_p, dv_p).astype(bf16)
    # Fold the score scale into the query projection (once, off the hot path).
    wq_p = _pad2(params["wq"].astype(f32) * scale, dq_p, h_p).astype(bf16)
    bq_p = _pad2(params["bq"].astype(f32) * scale, 1, h_p)
    wk_p = _pad2(params["wk"].astype(f32), dk_p, h_p).astype(bf16)
    bk_p = _pad2(params["bk"].astype(f32), 1, h_p)
    wv_p = _pad2(params["wv"].astype(f32), dv_p, o_p).astype(bf16)
    bv_p = _pad2(params["bv"].astype(f32), 1, o_p)

    # Projections hoisted out of the attention grid (each computed exactly once).
    lin_q = _linear(q_p, wq_p, bq_p, tile_rows=tq)     # (n_p, h_p) bf16
    lin_k = _linear(k_p, wk_p, bk_p, tile_rows=tkv)    # (m_p, h_p) bf16
    lin_v = _linear(v_p, wv_p, bv_p, tile_rows=tkv)    # (m_p, o_p) bf16

    in_specs = [
        pl.BlockSpec((tq, h_p), lambda i, j: (i, 0)),    # lin_q: per query tile
        pl.BlockSpec((tkv, h_p), lambda i, j: (j, 0)),   # lin_k: per K/V tile
        pl.BlockSpec((tkv, o_p), lambda i, j: (j, 0)),   # lin_v: per K/V tile
    ]
    inputs = [lin_q, lin_k, lin_v]
    if use_mask:
        seq_p = jnp.full((n_p, 1), m, dtype=jnp.int32)
        seq_p = seq_p.at[:n, 0].set(seq_lens.astype(jnp.int32))
        in_specs.append(pl.BlockSpec((tq, 1), lambda i, j: (i, 0)))
        inputs.append(seq_p)

    kernel = functools.partial(_flash_attn_kernel, m_valid=m,
                               use_mask=use_mask, tkv=tkv)

    out_padded = pl.pallas_call(
        kernel,
        out_shape=jax.ShapeDtypeStruct((n_p, o_p), jnp.float32),
        grid_spec=pltpu.PrefetchScalarGridSpec(
            num_scalar_prefetch=0,
            grid=(n_p // tq, m_p // tkv),
            in_specs=in_specs,
            out_specs=pl.BlockSpec((tq, o_p), lambda i, j: (i, 0)),
            scratch_shapes=[pltpu.VMEM((tq, 1), jnp.float32),    # running max
                            pltpu.VMEM((tq, 1), jnp.float32),    # running sum
                            pltpu.VMEM((tq, o_p), jnp.float32)],  # running acc
        ),
        compiler_params=pltpu.CompilerParams(
            dimension_semantics=("parallel", "arbitrary"),
            vmem_limit_bytes=_VMEM_LIMIT,
        ),
    )(*inputs)
    # TODO(synk): training-mode dropout (pltpu.prng_seed + stateful_bernoulli)
    # not implemented; eval-mode dropout is the identity.
    return out_padded[:n, :output_dim]


def _init_linear(key, in_dim, out_dim):
    # Mimic nn.Linear default init: U(-1/sqrt(in), 1/sqrt(in)); weight stored
    # pre-transposed as (in, out).
    bound = 1.0 / math.sqrt(in_dim)
    kw, kb = jax.random.split(key)
    w = jax.random.uniform(kw, (in_dim, out_dim), jnp.float32, -bound, bound)
    b = jax.random.uniform(kb, (1, out_dim), jnp.float32, -bound, bound)
    return w, b


def _reference(query, key, value, params, hidden_dim, seq_lens=None):
    lq = query @ params["wq"] + params["bq"]
    lk = key @ params["wk"] + params["bk"]
    lv = value @ params["wv"] + params["bv"]
    s = (lq @ lk.T) / math.sqrt(hidden_dim)
    if seq_lens is not None:
        col = jnp.arange(s.shape[1])[None, :]
        s = jnp.where(col < seq_lens[:, None], s, -1e9)
    p = jax.nn.softmax(s, axis=-1)
    return p @ lv


if __name__ == "__main__":
    # Small shapes consistent with the module's forward pass.
    query_dim, key_dim, value_dim = 16, 24, 20
    hidden_dim, output_dim = 32, 40
    n, m = 8, 12

    root = jax.random.PRNGKey(0)
    k_q, k_k, k_v, k_wq, k_wk, k_wv = jax.random.split(root, 6)

    input_query = jax.random.normal(k_q, (n, query_dim), jnp.float32)
    input_key = jax.random.normal(k_k, (m, key_dim), jnp.float32)
    input_value = jax.random.normal(k_v, (m, value_dim), jnp.float32)

    wq, bq = _init_linear(k_wq, query_dim, hidden_dim)
    wk, bk = _init_linear(k_wk, key_dim, hidden_dim)
    wv, bv = _init_linear(k_wv, value_dim, output_dim)
    params = {"wq": wq, "bq": bq, "wk": wk, "bk": bk, "wv": wv, "bv": bv}

    seq_lens = jnp.array([12, 10, 7, 12, 3, 9, 12, 5], dtype=jnp.int32)

    # No-mask path (seq_lens=None).
    out = qkv_attention(input_query, input_key, input_value, params,
                        hidden_dim=hidden_dim, output_dim=output_dim)
    out = jax.block_until_ready(out)
    ref = _reference(input_query, input_key, input_value, params, hidden_dim)
    assert out.shape == ref.shape
    # bf16 operands throughout + approx reciprocal => tolerance ~3e-2.
    assert jnp.allclose(out, ref, atol=3e-2, rtol=3e-2), (
        f"max abs diff {jnp.max(jnp.abs(out - ref))}")

    # Masked path (seq_lens provided).
    out_m = qkv_attention(input_query, input_key, input_value, params,
                          hidden_dim=hidden_dim, output_dim=output_dim,
                          seq_lens=seq_lens)
    out_m = jax.block_until_ready(out_m)
    ref_m = _reference(input_query, input_key, input_value, params, hidden_dim,
                       seq_lens=seq_lens)
    assert jnp.allclose(out_m, ref_m, atol=3e-2, rtol=3e-2), (
        f"max abs diff {jnp.max(jnp.abs(out_m - ref_m))}")

    print("KERNEL_OK")
</pallas_src>

<mosaic_0001>
module attributes {stable_mosaic.version = 11 : i64} {
  func.func @_linear_kernel(%arg0: i32, %arg1: memref<8x128xbf16, #tpu.memory_space<vmem>>, %arg2: memref<128x128xbf16, #tpu.memory_space<vmem>>, %arg3: memref<1x128xf32, #tpu.memory_space<vmem>>, %arg4: memref<8x128xbf16, #tpu.memory_space<vmem>>) attributes {dimension_semantics = [#tpu.dimension_semantics<parallel>], iteration_bounds = array<i64: 1>, scalar_prefetch = 0 : i64, scratch_operands = 0 : i64, tpu.core_type = #tpu.core_type<tc>, window_params = [{transform_indices = @transform_0, window_bounds = array<i64: 8, 128>}, {pipeline_mode = #tpu.pipeline_mode<synchronous>, transform_indices = @transform_1, window_bounds = array<i64: 128, 128>}, {pipeline_mode = #tpu.pipeline_mode<synchronous>, transform_indices = @transform_2, window_bounds = array<i64: 1, 128>}, {transform_indices = @transform_3, window_bounds = array<i64: 8, 128>}]} {
    %c0 = arith.constant 0 : index
    %c0_0 = arith.constant 0 : index
    %0 = vector.load %arg1[%c0, %c0_0] : memref<8x128xbf16, #tpu.memory_space<vmem>>, vector<8x128xbf16>
    %c0_1 = arith.constant 0 : index
    %c0_2 = arith.constant 0 : index
    %1 = vector.load %arg2[%c0_1, %c0_2] : memref<128x128xbf16, #tpu.memory_space<vmem>>, vector<128x128xbf16>
    %cst = arith.constant dense<0.000000e+00> : vector<8x128xf32>
    %2 = tpu.matmul %0, %1, %cst {dimension_numbers = #tpu.dot_dimension_numbers<[1], [0], [0], [1], [0, 0, 1, 1], [], []>} : vector<8x128xbf16>, vector<128x128xbf16>, vector<8x128xf32> -> vector<8x128xf32>
    %c0_3 = arith.constant 0 : index
    %c0_4 = arith.constant 0 : index
    %3 = vector.load %arg3[%c0_3, %c0_4] : memref<1x128xf32, #tpu.memory_space<vmem>>, vector<1x128xf32>
    %4 = vector.broadcast %3 : vector<1x128xf32> to vector<8x128xf32>
    %5 = arith.addf %2, %4 : vector<8x128xf32>
    %6 = arith.truncf %5 : vector<8x128xf32> to vector<8x128xbf16>
    %c0_5 = arith.constant 0 : index
    %c0_6 = arith.constant 0 : index
    %7 = vector.load %arg4[%c0_5, %c0_6] : memref<8x128xbf16, #tpu.memory_space<vmem>>, vector<8x128xbf16>
    tpu.vector_store %arg4[%c0_5, %c0_6], %6 {strides = array<i32>} : memref<8x128xbf16, #tpu.memory_space<vmem>>, vector<8x128xbf16>,
    return
  }
  func.func @transform_0(%arg0: i32) -> (i32, i32) {
    %c0_i32 = arith.constant 0 : i32
    %c0_i32_0 = arith.constant 0 : i32
    return %arg0, %c0_i32 : i32, i32
  }
  func.func @transform_1(%arg0: i32) -> (i32, i32) {
    %c0_i32 = arith.constant 0 : i32
    %c0_i32_0 = arith.constant 0 : i32
    %c0_i32_1 = arith.constant 0 : i32
    return %c0_i32, %c0_i32_0 : i32, i32
  }
  func.func @transform_2(%arg0: i32) -> (i32, i32) {
    %c0_i32 = arith.constant 0 : i32
    %c0_i32_0 = arith.constant 0 : i32
    %c0_i32_1 = arith.constant 0 : i32
    return %c0_i32, %c0_i32_0 : i32, i32
  }
  func.func @transform_3(%arg0: i32) -> (i32, i32) {
    %c0_i32 = arith.constant 0 : i32
    %c0_i32_0 = arith.constant 0 : i32
    return %arg0, %c0_i32 : i32, i32
  }
}

</mosaic_0001>

<llo_original>
// kernel: tpu_custom_call.1
$region0: #{tpu_custom_call.1}
  #allocation0 [shape = 'u32[]', space=smem, size = 0x4, offset = 0x4, fixed_abs, tag = 'smem constant byte address 0x4 - core index']
  #allocation1 [shape = 'u32[72,128]{1,0:T(1,128)}', space=vmem, size = 0x9000, scoped, tag = 'internal scratch']
  %s0 = inlined_call_operand.hbm [shape: bf16[8,128], index: 0, kind: input, shape index: {}]
  %s1 = inlined_call_operand.hbm [shape: bf16[128,128], index: 1, kind: input, shape index: {}]
  %s2 = inlined_call_operand.vmem [shape: f32[1,128], index: 2, kind: input, shape index: {}]
  %s3 = inlined_call_operand.hbm [shape: bf16[8,128], index: 3, kind: output, shape index: {}]
  %s4 = sld [smem:[#allocation0]]
  $region30: #{tpu_custom_call.1} parent=0
    _
  %s6 = ssub.s32 1, %s4
  %s7 = scalar_select 0, %s6, %s4
  $region1: #{tpu_custom_call.1} parent=0
    #allocation2 [shape = 'u8[2048]{0}', space=vmem, size = 0x800, scoped, tag = 'input window, operand 0, single buffered']
    #allocation3 [shape = 's32[1]{0}', space=sflag, size = 0x4, scoped, tag = 'scoped memory for tpu_custom_call.1']
    #allocation4 [shape = 's32[1]{0}', space=sflag, size = 0x4, scoped, tag = 'scoped memory for tpu_custom_call.1']
    #allocation5 [shape = 'u8[32768]{0}', space=vmem, size = 0x8000, scoped, tag = 'input window, operand 1, single buffered']
    #allocation6 [shape = 's32[1]{0}', space=sflag, size = 0x4, scoped, tag = 'scoped memory for tpu_custom_call.1']
    #allocation7 [shape = 'u8[2048]{0}', space=vmem, size = 0x800, scoped, tag = 'output window, operand 0, single buffered']
    %8 = vsyncpa [#allocation3], 0
    %9 = vsyncpa [#allocation6], 0
    %10 = vsyncpa [#allocation4], 0
    // Predicated region
    $region2: #{tpu_custom_call.1} parent=1 // pred_check
      _
    $region3: #{tpu_custom_call.1} parent=1 // pred_check_branch
      %12 = sbr.rel (0) target = $region5
    $region4: #{tpu_custom_call.1} parent=1 // pred_region
      %14 = vsyncadd [#allocation3], 0
      %s16 = sshll.u32 %s0, 4
      %s17 = int_to_ptr.hbm [resolvable:$true] %s16
      %s18 = sshll.u32 [#allocation2], 4
      %s19 = int_to_ptr.vmem [resolvable:$true] %s18
      %21 = dma.hbm_to_vmem [thread:$0]  %s17, 64, %s19, [#allocation3]
    $region5: #{tpu_custom_call.1} parent=1 // pred_fallthru
      _
    // Predicated region
    $region6: #{tpu_custom_call.1} parent=1 // pred_check
      _
    $region7: #{tpu_custom_call.1} parent=1 // pred_check_branch
      %23 = sbr.rel (0) target = $region9
    $region8: #{tpu_custom_call.1} parent=1 // pred_region
      %25 = vsyncadd [#allocation6], 0
      %s26 = sshll.u32 %s1, 4
      %s27 = int_to_ptr.hbm [resolvable:$true] %s26
      %s28 = sshll.u32 [#allocation5], 4
      %s29 = int_to_ptr.vmem [resolvable:$true] %s28
      %34 = dma.hbm_to_vmem [thread:$0]  %s27, 1024, %s29, [#allocation6], 64, 64, 4
    $region9: #{tpu_custom_call.1} parent=1 // pred_fallthru
      _
    // Predicated region
    $region10: #{tpu_custom_call.1} parent=1 // pred_check
      _
    $region11: #{tpu_custom_call.1} parent=1 // pred_check_branch
      %36 = sbr.rel (0) target = $region13
    $region12: #{tpu_custom_call.1} parent=1 // pred_region
      _
    $region13: #{tpu_custom_call.1} parent=1 // pred_fallthru
      _
    // Predicated region
    $region14: #{tpu_custom_call.1} parent=1 // pred_check
      _
    $region15: #{tpu_custom_call.1} parent=1 // pred_check_branch
      %38 = sbr.rel (0) target = $region17
    $region16: #{tpu_custom_call.1} parent=1 // pred_region
      %40 = dma.done [#allocation3], 64
    $region17: #{tpu_custom_call.1} parent=1 // pred_fallthru
      _
    // Predicated region
    $region18: #{tpu_custom_call.1} parent=1 // pred_check
      _
    $region19: #{tpu_custom_call.1} parent=1 // pred_check_branch
      %42 = sbr.rel (0) target = $region21
    $region20: #{tpu_custom_call.1} parent=1 // pred_region
      %44 = dma.done [#allocation6], 1024
    $region21: #{tpu_custom_call.1} parent=1 // pred_fallthru
      _
    %v45 = vld [vmem:[#allocation2] sm:$0xf]
    %v46 = vld [vmem:[#allocation5] sm:$0xf]
    %v47 = vld [vmem:[#allocation5 + $0x4] sm:$0xf]
    %v48 = vld [vmem:[#allocation5 + $0x8] sm:$0xf]
    %v49 = vld [vmem:[#allocation5 + $0xc] sm:$0xf]
    %v50 = vld [vmem:[#allocation5 + $0x10] sm:$0xf]
    %v51 = vld [vmem:[#allocation5 + $0x14] sm:$0xf]
    %v52 = vld [vmem:[#allocation5 + $0x18] sm:$0xf]
    %v53 = vld [vmem:[#allocation5 + $0x1c] sm:$0xf]
    %v54 = vld [vmem:[#allocation5 + $0x20] sm:$0xf]
    %v55 = vld [vmem:[#allocation5 + $0x24] sm:$0xf]
    %v56 = vld [vmem:[#allocation5 + $0x28] sm:$0xf]
    %v57 = vld [vmem:[#allocation5 + $0x2c] sm:$0xf]
    %v58 = vld [vmem:[#allocation5 + $0x30] sm:$0xf]
    %v59 = vld [vmem:[#allocation5 + $0x34] sm:$0xf]
    %v60 = vld [vmem:[#allocation5 + $0x38] sm:$0xf]
    %v61 = vld [vmem:[#allocation5 + $0x3c] sm:$0xf]
    %v62 = vld [vmem:[%s2] sm:$0x1]
    %v64 = vperm.slane %v62, 0
    %v82 = vunpack.c.l.b16 %v46
    %v83 = vunpack.c.l.b16 %v47
    %v84 = vunpack.c.l.b16 %v48
    %v85 = vunpack.c.l.b16 %v49
    %v86 = vunpack.c.l.b16 %v50
    %v87 = vunpack.c.l.b16 %v51
    %v88 = vunpack.c.l.b16 %v52
    %v89 = vunpack.c.l.b16 %v53
    %v90 = vunpack.c.l.b16 %v54
    %v91 = vunpack.c.l.b16 %v55
    %v92 = vunpack.c.l.b16 %v56
    %v93 = vunpack.c.l.b16 %v57
    %v94 = vunpack.c.l.b16 %v58
    %v95 = vunpack.c.l.b16 %v59
    %v96 = vunpack.c.l.b16 %v60
    %v97 = vunpack.c.l.b16 %v61
    %v98 = vpack.c.b16 %v83, %v82
    %v99 = vpack.c.b16 %v85, %v84
    %v100 = vpack.c.b16 %v87, %v86
    %v101 = vpack.c.b16 %v89, %v88
    %v102 = vpack.c.b16 %v91, %v90
    %v103 = vpack.c.b16 %v93, %v92
    %v104 = vpack.c.b16 %v95, %v94
    %v105 = vpack.c.b16 %v97, %v96
    %114 = vmatpush.bf16.msra.mxu0 %v105
    %115 = vmatpush.bf16.msra.mxu0 %v104
    %116 = vmatpush.bf16.msra.mxu0 %v103
    %117 = vmatpush.bf16.msra.mxu0 %v102
    %118 = vmatpush.bf16.msra.mxu0 %v101
    %119 = vmatpush.bf16.msra.mxu0 %v100
    %120 = vmatpush.bf16.msra.mxu0 %v99
    %121 = vmatpush.bf16.msra.mxu0 %v98
    %122 = vmatmul.bf16.gmra.mxu0 %v45
    %v123 = vpop.f32.mrf.mxu0
    %v124 = vadd.f32 %v64, %v123
    %v125 = vpop.f32.mrf.mxu0
    %126 = vdwg.mxu0
    %v127 = vpack.c.bf16 %v124, %v124
    %128 = vst [vmem:[#allocation7] sm:$0xf] %v127
    // Predicated region
    $region22: #{tpu_custom_call.1} parent=1 // pred_check
      _
    $region23: #{tpu_custom_call.1} parent=1 // pred_check_branch
      %130 = sbr.rel (0) target = $region25
    $region24: #{tpu_custom_call.1} parent=1 // pred_region
      %132 = vsyncadd [#allocation4], 0
      %s134 = sshll.u32 [#allocation7], 4
      %s135 = int_to_ptr.vmem [resolvable:$true] %s134
      %s136 = sshll.u32 %s3, 4
      %s137 = int_to_ptr.hbm [resolvable:$true] %s136
      %139 = dma.vmem_to_hbm [thread:$0]  %s135, 64, %s137, [#allocation4]
    $region25: #{tpu_custom_call.1} parent=1 // pred_fallthru
      _
    // Predicated region
    $region26: #{tpu_custom_call.1} parent=1 // pred_check
      _
    $region27: #{tpu_custom_call.1} parent=1 // pred_check_branch
      %141 = sbr.rel (0) target = $region29
    $region28: #{tpu_custom_call.1} parent=1 // pred_region
      %143 = dma.done [#allocation4], 64
    $region29: #{tpu_custom_call.1} parent=1 // pred_fallthru
      _
    %144 = vsyncpa [#allocation3], 1
    %145 = vsyncpa [#allocation6], 1
    %146 = vsyncpa [#allocation4], 1

</llo_original>
